<compile_context>
chip_gen: v7x
topology: tpu7x:2x2x1
jax: 0.10.0
libtpu: 0.0.40
codegen_flags: <defaults>
</compile_context>

<pallas_src>
import jax
import jax.numpy as jnp
from jax.experimental import pallas as pl
from jax.experimental.pallas import tpu as pltpu


def _round_up(x, m):
    return ((x + m - 1) // m) * m


def mean_pool_kernel(ids_ref, mask_ref, tbl_ref, w_ref, b_ref, out_ref,
                     acc_ref, msum_ref):
    # ids_ref : (TB, TS) int32  token ids (masked/pad tokens remapped to the zero row)
    # mask_ref: (TB, TS) f32    attention-mask chunk
    # tbl_ref : (VP, HP) bf16   resident embedding table (rows >= V are zero)
    # w_ref   : (HP, HP) bf16   resident dense projection weight
    # b_ref   : (1, HP)  f32    resident dense projection bias
    # out_ref : (TB, HP) f32    pooled sentence embeddings (written on last S step)
    # acc_ref : (TB, HP) f32    VMEM accumulator: masked sum of token embeddings
    # msum_ref: (TB, 1)  f32    VMEM accumulator: number of attended tokens
    s = pl.program_id(1)

    @pl.when(s == 0)
    def _init():
        acc_ref[...] = jnp.zeros_like(acc_ref)
        msum_ref[...] = jnp.zeros_like(msum_ref)

    ids = ids_ref[...]                                             # (TB, TS)
    mask = mask_ref[...]                                           # (TB, TS)
    tb, ts = ids.shape
    vp = tbl_ref.shape[0]

    # MXU one-hot gather (small-vocab path):
    #   counts[b, v] = number of tokens in this chunk with id v (<= TS, exact even
    #   after the bf16 cast since TS <= 256), then sum_s table[ids[b,s]] = counts @ table.
    # Masked / padding tokens were remapped to the all-zero row in the wrapper,
    # so no mask multiply (and no mask lane-broadcast) is needed here.
    vocab_iota = jax.lax.broadcasted_iota(jnp.int32, (tb, ts, vp), 2)
    onehot = (ids[:, :, None] == vocab_iota).astype(jnp.float32)   # (TB, TS, VP)
    counts = jnp.sum(onehot, axis=1)                               # (TB, VP)
    acc_ref[...] += jnp.dot(counts.astype(jnp.bfloat16), tbl_ref[...],
                            preferred_element_type=jnp.float32)    # (TB, HP) f32
    msum_ref[...] += jnp.sum(mask, axis=1, keepdims=True)          # (TB, 1)

    @pl.when(s == pl.num_programs(1) - 1)
    def _finalize():
        msum = msum_ref[...]
        # EUP reciprocal (free slot); exact 0/1 gate handles fully-masked rows,
        # reproducing sum(mask*(emb@W + b)) / clamp(sum mask, 1e-9) exactly.
        inv = pl.reciprocal(jnp.maximum(msum, 1e-9), approx=True)  # (TB, 1)
        gate = jnp.where(msum > 0.0, 1.0, 0.0)                     # (TB, 1)
        # Pool-before-project: one well-shaped MXU matmul per batch tile.
        scaled = (acc_ref[...] * inv).astype(jnp.bfloat16)         # (TB, HP)
        proj = jnp.dot(scaled, w_ref[...],
                       preferred_element_type=jnp.float32)         # (TB, HP)
        out_ref[...] = (proj + b_ref[...] * gate).astype(out_ref.dtype)


def mean_pooling_encoder(input_ids, attention_mask, emb_table, w, b):
    """Synthetic encoder + masked mean pooling, fully fused inside Pallas."""
    B, S = input_ids.shape
    V, H = emb_table.shape

    HP = _round_up(H, 128)          # lane-dense hidden dim
    VP = _round_up(V + 1, 128)      # +1 all-zero row for masked / padding tokens

    # Batch tile (sublane-dense).  Production sizing: 128 (v5e MXU) / 256 (v6e,
    # v7x); budget tb*TS*VP*4B (one-hot) + tb*HP*4B (acc) + resident table/W
    # against the scoped VMEM limit (<= ~48 MiB on v7x, ~64-96 MiB on v5e/v6e).
    tb = min(128, _round_up(B, 8))
    BP = _round_up(B, tb)

    # Token-axis tile: the reduction ("arbitrary") grid axis, placed last so the
    # accumulator stays resident.  Either TS == (padded) S or a multiple of 128.
    ts = min(512, _round_up(S, 8))
    SP = _round_up(S, ts)

    tbl_p = jnp.zeros((VP, HP), jnp.bfloat16).at[:V, :H].set(
        emb_table.astype(jnp.bfloat16))
    w_p = jnp.zeros((HP, HP), jnp.bfloat16).at[:H, :H].set(w.astype(jnp.bfloat16))
    b_p = jnp.zeros((1, HP), jnp.float32).at[0, :H].set(b.astype(jnp.float32))

    # Push masking into the gather: masked-out tokens point at the all-zero row
    # V; batch / sequence padding also points there (mask = 0 -> msum gate = 0).
    ids_masked = jnp.where(attention_mask != 0, input_ids.astype(jnp.int32), V)
    ids_p = jnp.full((BP, SP), V, jnp.int32).at[:B, :S].set(ids_masked)
    mask_p = jnp.zeros((BP, SP), jnp.float32).at[:B, :S].set(
        attention_mask.astype(jnp.float32))

    # TODO(synk): the AutoModel transformer stack is replaced by this synthetic
    # embedding + single linear projection; for a production-sized vocab the
    # one-hot MXU gather should be replaced by scalar-prefetched ids + manual
    # make_async_copy row DMAs from an HBM-resident (pl.ANY) table.

    out = pl.pallas_call(
        mean_pool_kernel,
        out_shape=jax.ShapeDtypeStruct((BP, HP), jnp.float32),
        grid_spec=pltpu.PrefetchScalarGridSpec(
            num_scalar_prefetch=0,
            grid=(BP // tb, SP // ts),                      # (batch tiles, token chunks)
            in_specs=[
                pl.BlockSpec((tb, ts), lambda i, s: (i, s)),   # ids chunk
                pl.BlockSpec((tb, ts), lambda i, s: (i, s)),   # mask chunk
                pl.BlockSpec((VP, HP), lambda i, s: (0, 0)),   # resident table
                pl.BlockSpec((HP, HP), lambda i, s: (0, 0)),   # resident W
                pl.BlockSpec((1, HP), lambda i, s: (0, 0)),    # resident bias
            ],
            out_specs=pl.BlockSpec((tb, HP), lambda i, s: (i, 0)),  # lane-dense, resident over s
            scratch_shapes=[
                pltpu.VMEM((tb, HP), jnp.float32),   # pooled-sum accumulator
                pltpu.VMEM((tb, 1), jnp.float32),    # attended-token count
            ],
        ),
        compiler_params=pltpu.CompilerParams(
            # Batch tiles split across v7x's two TensorCores; token axis is the
            # reduction and stays last.  (Resident table/W could additionally use
            # pipeline_mode=pl.Buffered(1) to reclaim their double-buffer on v7x.)
            dimension_semantics=("parallel", "arbitrary"),
            vmem_limit_bytes=48 * 1024 * 1024,
        ),
    )(ids_p, mask_p, tbl_p, w_p, b_p)

    return out[:B, :H]


if __name__ == "__main__":
    B, S, H, VOCAB = 2, 8, 32, 64

    key = jax.random.PRNGKey(0)
    k_ids, k_tbl, k_w, k_b = jax.random.split(key, 4)

    input_ids = jax.random.randint(k_ids, (B, S), 0, VOCAB, dtype=jnp.int32)
    # First example fully attended; second has padding at the tail.
    attention_mask = jnp.array(
        [[1, 1, 1, 1, 1, 1, 1, 1],
         [1, 1, 1, 1, 1, 0, 0, 0]], dtype=jnp.int32)

    emb_table = jax.random.normal(k_tbl, (VOCAB, H), dtype=jnp.float32) * 0.1
    w = jax.random.normal(k_w, (H, H), dtype=jnp.float32) * 0.1
    b = jax.random.normal(k_b, (H,), dtype=jnp.float32) * 0.1

    out = mean_pooling_encoder(input_ids, attention_mask, emb_table, w, b)
    out = jax.block_until_ready(out)

    # Pure-JAX f32 reference with the original torch semantics
    # (project every token, then masked mean pool).
    emb_ref = jnp.take(emb_table, input_ids, axis=0)
    hidden_ref = jnp.einsum("bsh,hk->bsk", emb_ref, w) + b
    mask_e = attention_mask.astype(jnp.float32)[..., None]
    ref = (hidden_ref * mask_e).sum(axis=1) / jnp.maximum(
        mask_e.sum(axis=1), 1e-9)

    assert out.shape == (B, H) and out.dtype == jnp.float32
    # Kernel uses bf16 MXU operands (f32 accumulate) + EUP approx reciprocal vs
    # the all-f32 reference, so allow bf16-level rounding.
    err = float(jnp.max(jnp.abs(out - ref)))
    assert jnp.allclose(out, ref, atol=2e-2, rtol=2e-2), f"max abs err {err}"
    print("KERNEL_OK")
</pallas_src>

<mosaic_0001>
module attributes {stable_mosaic.version = 11 : i64} {
  func.func @mean_pool_kernel(%arg0: i32, %arg1: i32, %arg2: memref<8x8xi32, #tpu.memory_space<vmem>>, %arg3: memref<8x8xf32, #tpu.memory_space<vmem>>, %arg4: memref<128x128xbf16, #tpu.memory_space<vmem>>, %arg5: memref<128x128xbf16, #tpu.memory_space<vmem>>, %arg6: memref<1x128xf32, #tpu.memory_space<vmem>>, %arg7: memref<8x128xf32, #tpu.memory_space<vmem>>, %arg8: memref<8x128xf32, #tpu.memory_space<vmem>>, %arg9: memref<8x1xf32, #tpu.memory_space<vmem>>) attributes {dimension_semantics = [#tpu.dimension_semantics<parallel>, #tpu.dimension_semantics<arbitrary>], iteration_bounds = array<i64: 1, 1>, scalar_prefetch = 0 : i64, scratch_operands = 2 : i64, tpu.core_type = #tpu.core_type<tc>, window_params = [{transform_indices = @transform_0, window_bounds = array<i64: 8, 8>}, {transform_indices = @transform_1, window_bounds = array<i64: 8, 8>}, {pipeline_mode = #tpu.pipeline_mode<synchronous>, transform_indices = @transform_2, window_bounds = array<i64: 128, 128>}, {pipeline_mode = #tpu.pipeline_mode<synchronous>, transform_indices = @transform_3, window_bounds = array<i64: 128, 128>}, {pipeline_mode = #tpu.pipeline_mode<synchronous>, transform_indices = @transform_4, window_bounds = array<i64: 1, 128>}, {transform_indices = @transform_5, window_bounds = array<i64: 8, 128>}]} {
    %c0_i32 = arith.constant 0 : i32
    %0 = arith.cmpi eq, %arg1, %c0_i32 : i32
    %1 = arith.extui %0 : i1 to i32
    %c0_i32_0 = arith.constant 0 : i32
    %2 = arith.cmpi ne, %1, %c0_i32_0 : i32
    scf.if %2 {
      %cst_18 = arith.constant 0.000000e+00 : f32
      %26 = vector.broadcast %cst_18 : f32 to vector<8x128xf32>
      %c0_19 = arith.constant 0 : index
      %c0_20 = arith.constant 0 : index
      %27 = vector.load %arg8[%c0_19, %c0_20] : memref<8x128xf32, #tpu.memory_space<vmem>>, vector<8x128xf32>
      tpu.vector_store %arg8[%c0_19, %c0_20], %26 {strides = array<i32>} : memref<8x128xf32, #tpu.memory_space<vmem>>, vector<8x128xf32>,
      %cst_21 = arith.constant 0.000000e+00 : f32
      %28 = vector.broadcast %cst_21 : f32 to vector<8x1xf32>
      %c0_22 = arith.constant 0 : index
      %c0_23 = arith.constant 0 : index
      %29 = vector.load %arg9[%c0_22, %c0_23] : memref<8x1xf32, #tpu.memory_space<vmem>>, vector<8x1xf32>
      tpu.vector_store %arg9[%c0_22, %c0_23], %28 {strides = array<i32>} : memref<8x1xf32, #tpu.memory_space<vmem>>, vector<8x1xf32>,
    } else {
    }
    %c0 = arith.constant 0 : index
    %c0_1 = arith.constant 0 : index
    %3 = vector.load %arg2[%c0, %c0_1] : memref<8x8xi32, #tpu.memory_space<vmem>>, vector<8x8xi32>
    %c0_2 = arith.constant 0 : index
    %c0_3 = arith.constant 0 : index
    %4 = vector.load %arg3[%c0_2, %c0_3] : memref<8x8xf32, #tpu.memory_space<vmem>>, vector<8x8xf32>
    %5 = tpu.iota {dimensions = array<i32: 2>} : vector<8x8x128xi32>
    %6 = vector.shape_cast %3 : vector<8x8xi32> to vector<8x8x1xi32>
    %7 = vector.broadcast %6 : vector<8x8x1xi32> to vector<8x8x128xi32>
    %8 = arith.cmpi eq, %7, %5 : vector<8x8x128xi32>
    %9 = arith.extui %8 : vector<8x8x128xi1> to vector<8x8x128xi32>
    %10 = arith.sitofp %9 : vector<8x8x128xi32> to vector<8x8x128xf32>
    %cst = arith.constant dense<0.000000e+00> : vector<8x128xf32>
    %11 = vector.multi_reduction <add>, %10, %cst [1] : vector<8x8x128xf32> to vector<8x128xf32>
    %c0_4 = arith.constant 0 : index
    %c0_5 = arith.constant 0 : index
    %12 = vector.load %arg8[%c0_4, %c0_5] : memref<8x128xf32, #tpu.memory_space<vmem>>, vector<8x128xf32>
    %13 = arith.truncf %11 : vector<8x128xf32> to vector<8x128xbf16>
    %c0_6 = arith.constant 0 : index
    %c0_7 = arith.constant 0 : index
    %14 = vector.load %arg4[%c0_6, %c0_7] : memref<128x128xbf16, #tpu.memory_space<vmem>>, vector<128x128xbf16>
    %cst_8 = arith.constant dense<0.000000e+00> : vector<8x128xf32>
    %15 = tpu.matmul %13, %14, %cst_8 {dimension_numbers = #tpu.dot_dimension_numbers<[1], [0], [0], [1], [0, 0, 1, 1], [], []>} : vector<8x128xbf16>, vector<128x128xbf16>, vector<8x128xf32> -> vector<8x128xf32>
    %16 = arith.addf %12, %15 : vector<8x128xf32>
    %c0_9 = arith.constant 0 : index
    %c0_10 = arith.constant 0 : index
    %17 = vector.load %arg8[%c0_9, %c0_10] : memref<8x128xf32, #tpu.memory_space<vmem>>, vector<8x128xf32>
    tpu.vector_store %arg8[%c0_9, %c0_10], %16 {strides = array<i32>} : memref<8x128xf32, #tpu.memory_space<vmem>>, vector<8x128xf32>,
    %c0_11 = arith.constant 0 : index
    %c0_12 = arith.constant 0 : index
    %18 = vector.load %arg9[%c0_11, %c0_12] : memref<8x1xf32, #tpu.memory_space<vmem>>, vector<8x1xf32>
    %cst_13 = arith.constant dense<0.000000e+00> : vector<8xf32>
    %19 = vector.multi_reduction <add>, %4, %cst_13 [1] : vector<8x8xf32> to vector<8xf32>
    %20 = vector.shape_cast %19 : vector<8xf32> to vector<8x1xf32>
    %21 = arith.addf %18, %20 : vector<8x1xf32>
    %c0_14 = arith.constant 0 : index
    %c0_15 = arith.constant 0 : index
    %22 = vector.load %arg9[%c0_14, %c0_15] : memref<8x1xf32, #tpu.memory_space<vmem>>, vector<8x1xf32>
    tpu.vector_store %arg9[%c0_14, %c0_15], %21 {strides = array<i32>} : memref<8x1xf32, #tpu.memory_space<vmem>>, vector<8x1xf32>,
    %c0_i32_16 = arith.constant 0 : i32
    %23 = arith.cmpi eq, %arg1, %c0_i32_16 : i32
    %24 = arith.extui %23 : i1 to i32
    %c0_i32_17 = arith.constant 0 : i32
    %25 = arith.cmpi ne, %24, %c0_i32_17 : i32
    scf.if %25 {
      %c0_18 = arith.constant 0 : index
      %c0_19 = arith.constant 0 : index
      %26 = vector.load %arg9[%c0_18, %c0_19] : memref<8x1xf32, #tpu.memory_space<vmem>>, vector<8x1xf32>
      %cst_20 = arith.constant 9.99999971E-10 : f32
      %27 = vector.broadcast %cst_20 : f32 to vector<8x1xf32>
      %28 = arith.maximumf %26, %27 : vector<8x1xf32>
      %29 = tpu.reciprocal %28 {approx = true} : vector<8x1xf32> -> vector<8x1xf32>
      %cst_21 = arith.constant 0.000000e+00 : f32
      %30 = vector.broadcast %cst_21 : f32 to vector<8x1xf32>
      %31 = arith.cmpf ogt, %26, %30 : vector<8x1xf32>
      %cst_22 = arith.constant 1.000000e+00 : f32
      %cst_23 = arith.constant 0.000000e+00 : f32
      %32 = vector.broadcast %cst_22 : f32 to vector<8x1xf32>
      %33 = vector.broadcast %cst_23 : f32 to vector<8x1xf32>
      %34 = arith.select %31, %32, %33 : vector<8x1xi1>, vector<8x1xf32>
      %c0_24 = arith.constant 0 : index
      %c0_25 = arith.constant 0 : index
      %35 = vector.load %arg8[%c0_24, %c0_25] : memref<8x128xf32, #tpu.memory_space<vmem>>, vector<8x128xf32>
      %36 = vector.broadcast %29 : vector<8x1xf32> to vector<8x128xf32>
      %37 = arith.mulf %35, %36 : vector<8x128xf32>
      %38 = arith.truncf %37 : vector<8x128xf32> to vector<8x128xbf16>
      %c0_26 = arith.constant 0 : index
      %c0_27 = arith.constant 0 : index
      %39 = vector.load %arg5[%c0_26, %c0_27] : memref<128x128xbf16, #tpu.memory_space<vmem>>, vector<128x128xbf16>
      %cst_28 = arith.constant dense<0.000000e+00> : vector<8x128xf32>
      %40 = tpu.matmul %38, %39, %cst_28 {dimension_numbers = #tpu.dot_dimension_numbers<[1], [0], [0], [1], [0, 0, 1, 1], [], []>} : vector<8x128xbf16>, vector<128x128xbf16>, vector<8x128xf32> -> vector<8x128xf32>
      %c0_29 = arith.constant 0 : index
      %c0_30 = arith.constant 0 : index
      %41 = vector.load %arg6[%c0_29, %c0_30] : memref<1x128xf32, #tpu.memory_space<vmem>>, vector<1x128xf32>
      %42 = vector.broadcast %41 : vector<1x128xf32> to vector<8x128xf32>
      %43 = vector.broadcast %34 : vector<8x1xf32> to vector<8x128xf32>
      %44 = arith.mulf %42, %43 : vector<8x128xf32>
      %45 = arith.addf %40, %44 : vector<8x128xf32>
      %c0_31 = arith.constant 0 : index
      %c0_32 = arith.constant 0 : index
      %46 = vector.load %arg7[%c0_31, %c0_32] : memref<8x128xf32, #tpu.memory_space<vmem>>, vector<8x128xf32>
      tpu.vector_store %arg7[%c0_31, %c0_32], %45 {strides = array<i32>} : memref<8x128xf32, #tpu.memory_space<vmem>>, vector<8x128xf32>,
    } else {
    }
    return
  }
  func.func @transform_0(%arg0: i32, %arg1: i32) -> (i32, i32) {
    %c0_i32 = arith.constant 0 : i32
    return %arg0, %arg1 : i32, i32
  }
  func.func @transform_1(%arg0: i32, %arg1: i32) -> (i32, i32) {
    %c0_i32 = arith.constant 0 : i32
    return %arg0, %arg1 : i32, i32
  }
  func.func @transform_2(%arg0: i32, %arg1: i32) -> (i32, i32) {
    %c0_i32 = arith.constant 0 : i32
    %c0_i32_0 = arith.constant 0 : i32
    %c0_i32_1 = arith.constant 0 : i32
    return %c0_i32, %c0_i32_0 : i32, i32
  }
  func.func @transform_3(%arg0: i32, %arg1: i32) -> (i32, i32) {
    %c0_i32 = arith.constant 0 : i32
    %c0_i32_0 = arith.constant 0 : i32
    %c0_i32_1 = arith.constant 0 : i32
    return %c0_i32, %c0_i32_0 : i32, i32
  }
  func.func @transform_4(%arg0: i32, %arg1: i32) -> (i32, i32) {
    %c0_i32 = arith.constant 0 : i32
    %c0_i32_0 = arith.constant 0 : i32
    %c0_i32_1 = arith.constant 0 : i32
    return %c0_i32, %c0_i32_0 : i32, i32
  }
  func.func @transform_5(%arg0: i32, %arg1: i32) -> (i32, i32) {
    %c0_i32 = arith.constant 0 : i32
    %c0_i32_0 = arith.constant 0 : i32
    return %arg0, %c0_i32 : i32, i32
  }
}

</mosaic_0001>

<llo_original>
// kernel: tpu_custom_call.1
$region0: #{tpu_custom_call.1}
  #allocation0 [shape = 'u32[]', space=smem, size = 0x4, offset = 0x4, fixed_abs, tag = 'smem constant byte address 0x4 - core index']
  #allocation1 [shape = 'u32[144,128]{1,0:T(1,128)}', space=vmem, size = 0x12000, scoped, tag = 'internal scratch']
  #allocation2 [shape = 'f32[8,128]{1,0:T(8,128)}', space=vmem, size = 0x1000, scoped, tag = 'scratch operand']
  #allocation3 [shape = 'f32[8,1]{1,0:T(8,128)}', space=vmem, size = 0x1000, scoped, tag = 'scratch operand']
  %s0 = inlined_call_operand.hbm [shape: s32[8,8], index: 0, kind: input, shape index: {}]
  %s1 = inlined_call_operand.hbm [shape: f32[8,8], index: 1, kind: input, shape index: {}]
  %s2 = inlined_call_operand.hbm [shape: bf16[128,128], index: 2, kind: input, shape index: {}]
  %s3 = inlined_call_operand.hbm [shape: bf16[128,128], index: 3, kind: input, shape index: {}]
  %s4 = inlined_call_operand.vmem [shape: f32[1,128], index: 4, kind: input, shape index: {}]
  %s5 = inlined_call_operand.hbm [shape: f32[8,128], index: 5, kind: output, shape index: {}]
  %s6 = sld [smem:[#allocation0]]
  $region54: #{tpu_custom_call.1} parent=0
    _
  %s8 = ssub.s32 1, %s6
  %s9 = scalar_select 0, %s8, %s6
  $region1: #{tpu_custom_call.1} parent=0
    #allocation4 [shape = 'u8[4096]{0}', space=vmem, size = 0x1000, scoped, tag = 'input window, operand 0, single buffered']
    #allocation5 [shape = 's32[1]{0}', space=sflag, size = 0x4, scoped, tag = 'scoped memory for tpu_custom_call.1']
    #allocation6 [shape = 's32[1]{0}', space=sflag, size = 0x4, scoped, tag = 'scoped memory for tpu_custom_call.1']
    #allocation7 [shape = 'u8[4096]{0}', space=vmem, size = 0x1000, scoped, tag = 'input window, operand 1, single buffered']
    #allocation8 [shape = 's32[1]{0}', space=sflag, size = 0x4, scoped, tag = 'scoped memory for tpu_custom_call.1']
    #allocation9 [shape = 'u8[32768]{0}', space=vmem, size = 0x8000, scoped, tag = 'input window, operand 2, single buffered']
    #allocation10 [shape = 'u8[32768]{0}', space=vmem, size = 0x8000, scoped, tag = 'input window, operand 3, single buffered']
    #allocation11 [shape = 's32[1]{0}', space=sflag, size = 0x4, scoped, tag = 'scoped memory for tpu_custom_call.1']
    #allocation12 [shape = 'u8[4096]{0}', space=vmem, size = 0x1000, scoped, tag = 'output window, operand 0, single buffered']
    %10 = vsyncpa [#allocation5], 0
    %11 = vsyncpa [#allocation8], 0
    %12 = vsyncpa [#allocation11], 0
    %13 = vsyncpa [#allocation6], 0
    // Predicated region
    $region2: #{tpu_custom_call.1} parent=1 // pred_check
      _
    $region3: #{tpu_custom_call.1} parent=1 // pred_check_branch
      %15 = sbr.rel (0) target = $region5
    $region4: #{tpu_custom_call.1} parent=1 // pred_region
      %s17 = ssub.s32 128, 128
      %18 = vsyncadd [#allocation5], %s17
      %s20 = sshll.u32 [#allocation4], 4
      %s21 = int_to_ptr.vmem [resolvable:$true] %s20
      %23 = dma.hbm_to_vmem [thread:$0]  %s0, 128, %s21, [#allocation5]
    $region5: #{tpu_custom_call.1} parent=1 // pred_fallthru
      _
    // Predicated region
    $region6: #{tpu_custom_call.1} parent=1 // pred_check
      _
    $region7: #{tpu_custom_call.1} parent=1 // pred_check_branch
      %25 = sbr.rel (0) target = $region9
    $region8: #{tpu_custom_call.1} parent=1 // pred_region
      %s27 = ssub.s32 128, 128
      %28 = vsyncadd [#allocation8], %s27
      %s30 = sshll.u32 [#allocation7], 4
      %s31 = int_to_ptr.vmem [resolvable:$true] %s30
      %33 = dma.hbm_to_vmem [thread:$0]  %s1, 128, %s31, [#allocation8]
    $region9: #{tpu_custom_call.1} parent=1 // pred_fallthru
      _
    // Predicated region
    $region10: #{tpu_custom_call.1} parent=1 // pred_check
      _
    $region11: #{tpu_custom_call.1} parent=1 // pred_check_branch
      %35 = sbr.rel (0) target = $region13
    $region12: #{tpu_custom_call.1} parent=1 // pred_region
      %s37 = ssub.s32 1024, 1024
      %38 = vsyncadd [#allocation8], %s37
      %s39 = sshll.u32 [#allocation9], 4
      %s40 = int_to_ptr.vmem [resolvable:$true] %s39
      %45 = dma.hbm_to_vmem [thread:$0]  %s2, 1024, %s40, [#allocation8], 64, 64, 4
    $region13: #{tpu_custom_call.1} parent=1 // pred_fallthru
      _
    // Predicated region
    $region14: #{tpu_custom_call.1} parent=1 // pred_check
      _
    $region15: #{tpu_custom_call.1} parent=1 // pred_check_branch
      %47 = sbr.rel (0) target = $region17
    $region16: #{tpu_custom_call.1} parent=1 // pred_region
      %s49 = ssub.s32 1024, 1024
      %50 = vsyncadd [#allocation11], %s49
      %s51 = sshll.u32 [#allocation10], 4
      %s52 = int_to_ptr.vmem [resolvable:$true] %s51
      %57 = dma.hbm_to_vmem [thread:$0]  %s3, 1024, %s52, [#allocation11], 64, 64, 4
    $region17: #{tpu_custom_call.1} parent=1 // pred_fallthru
      _
    // Predicated region
    $region18: #{tpu_custom_call.1} parent=1 // pred_check
      _
    $region19: #{tpu_custom_call.1} parent=1 // pred_check_branch
      %59 = sbr.rel (0) target = $region21
    $region20: #{tpu_custom_call.1} parent=1 // pred_region
      _
    $region21: #{tpu_custom_call.1} parent=1 // pred_fallthru
      _
    // Predicated region
    $region22: #{tpu_custom_call.1} parent=1 // pred_check
      _
    $region23: #{tpu_custom_call.1} parent=1 // pred_check_branch
      %61 = sbr.rel (0) target = $region25
    $region24: #{tpu_custom_call.1} parent=1 // pred_region
      %62 = dma.done [#allocation5], 128
    $region25: #{tpu_custom_call.1} parent=1 // pred_fallthru
      _
    // Predicated region
    $region26: #{tpu_custom_call.1} parent=1 // pred_check
      _
    $region27: #{tpu_custom_call.1} parent=1 // pred_check_branch
      %64 = sbr.rel (0) target = $region29
    $region28: #{tpu_custom_call.1} parent=1 // pred_region
      %65 = dma.done [#allocation8], 128
    $region29: #{tpu_custom_call.1} parent=1 // pred_fallthru
      _
    // Predicated region
    $region30: #{tpu_custom_call.1} parent=1 // pred_check
      _
    $region31: #{tpu_custom_call.1} parent=1 // pred_check_branch
      %67 = sbr.rel (0) target = $region33
    $region32: #{tpu_custom_call.1} parent=1 // pred_region
      %68 = dma.done [#allocation8], 1024
    $region33: #{tpu_custom_call.1} parent=1 // pred_fallthru
      _
    // Predicated region
    $region34: #{tpu_custom_call.1} parent=1 // pred_check
      _
    $region35: #{tpu_custom_call.1} parent=1 // pred_check_branch
      %70 = sbr.rel (0) target = $region37
    $region36: #{tpu_custom_call.1} parent=1 // pred_region
      %71 = dma.done [#allocation11], 1024
    $region37: #{tpu_custom_call.1} parent=1 // pred_fallthru
      _
    %p73 = scmp.eq.s32.totalorder 0, 0
    // Predicated region
    $region38: #{tpu_custom_call.1} parent=1 // pred_check
      %p74 = pneg %p73
    $region39: #{tpu_custom_call.1} parent=1 // pred_check_branch
      %76 = sbr.rel (%p74) target = $region41
    $region40: #{tpu_custom_call.1} parent=1 // pred_region
      %77 = vst [vmem:[#allocation2] sm:$0xff] 0.0
      %vm78 = vcmask 7168
      %79 = vst.msk [vmem:[#allocation3] sm:$0xff] %vm78, 0.0
    $region41: #{tpu_custom_call.1} parent=1 // pred_fallthru
      _
    %v80 = vld [vmem:[#allocation4] sm:$0xff]
    %v81 = vld [vmem:[#allocation7] sm:$0xff]
    %v82 = vlaneseq
    %v83 = vand.u32 %v82, 127
    %v84 = vlaneseq
    %v85 = vshrl.u32 %v84, 7
    %v86 = vsub.s32 0, %v85
    %v87 = vrot.slane %v80, %v86
    %89 = vbcast.lane.b32.xlu0 %v87, 256
    %v90 = vpop.permute.xlu0 %89
    %v91 = vlaneseq
    %v92 = vshrl.u32 %v91, 7
    %v93 = vsub.s32 1, %v92
    %v94 = vrot.slane %v80, %v93
    %96 = vbcast.lane.b32.xlu0 %v94, 256
    %v97 = vpop.permute.xlu0 %96
    %v98 = vlaneseq
    %v99 = vshrl.u32 %v98, 7
    %v100 = vsub.s32 2, %v99
    %v101 = vrot.slane %v80, %v100
    %103 = vbcast.lane.b32.xlu0 %v101, 256
    %v104 = vpop.permute.xlu0 %103
    %v105 = vlaneseq
    %v106 = vshrl.u32 %v105, 7
    %v107 = vsub.s32 3, %v106
    %v108 = vrot.slane %v80, %v107
    %110 = vbcast.lane.b32.xlu0 %v108, 256
    %v111 = vpop.permute.xlu0 %110
    %v112 = vlaneseq
    %v113 = vshrl.u32 %v112, 7
    %v114 = vsub.s32 4, %v113
    %v115 = vrot.slane %v80, %v114
    %117 = vbcast.lane.b32.xlu0 %v115, 256
    %v118 = vpop.permute.xlu0 %117
    %v119 = vlaneseq
    %v120 = vshrl.u32 %v119, 7
    %v121 = vsub.s32 5, %v120
    %v122 = vrot.slane %v80, %v121
    %124 = vbcast.lane.b32.xlu0 %v122, 256
    %v125 = vpop.permute.xlu0 %124
    %v126 = vlaneseq
    %v127 = vshrl.u32 %v126, 7
    %v128 = vsub.s32 6, %v127
    %v129 = vrot.slane %v80, %v128
    %131 = vbcast.lane.b32.xlu0 %v129, 256
    %v132 = vpop.permute.xlu0 %131
    %v133 = vlaneseq
    %v134 = vshrl.u32 %v133, 7
    %v135 = vsub.s32 7, %v134
    %v136 = vrot.slane %v80, %v135
    %138 = vbcast.lane.b32.xlu0 %v136, 256
    %v139 = vpop.permute.xlu0 %138
    %vm140 = vcmp.eq.s32.totalorder %v90, %v83
    %vm141 = vcmp.eq.s32.totalorder %v97, %v83
    %vm142 = vcmp.eq.s32.totalorder %v104, %v83
    %vm143 = vcmp.eq.s32.totalorder %v111, %v83
    %vm144 = vcmp.eq.s32.totalorder %v118, %v83
    %vm145 = vcmp.eq.s32.totalorder %v125, %v83
    %vm146 = vcmp.eq.s32.totalorder %v132, %v83
    %vm147 = vcmp.eq.s32.totalorder %v139, %v83
    %v148 = vsel %vm140, 1, 0
    %v149 = vsel %vm141, 1, 0
    %v150 = vsel %vm142, 1, 0
    %v151 = vsel %vm143, 1, 0
    %v152 = vsel %vm144, 1, 0
    %v153 = vsel %vm145, 1, 0
    %v154 = vsel %vm146, 1, 0
    %v155 = vsel %vm147, 1, 0
    %v156 = vcvt.s32.f32 %v148
    %v157 = vcvt.s32.f32 %v149
    %v158 = vcvt.s32.f32 %v150
    %v159 = vcvt.s32.f32 %v151
    %v160 = vcvt.s32.f32 %v152
    %v161 = vcvt.s32.f32 %v153
    %v162 = vcvt.s32.f32 %v154
    %v163 = vcvt.s32.f32 %v155
    %v164 = vrot.slane %v156, 4
    %v165 = vadd.f32 %v156, %v164
    %v166 = vrot.slane %v165, 2
    %v167 = vadd.f32 %v165, %v166
    %v168 = vrot.slane %v167, 1
    %v169 = vadd.f32 %v167, %v168
    %v170 = vrot.slane %v157, 4
    %v171 = vadd.f32 %v157, %v170
    %v172 = vrot.slane %v171, 2
    %v173 = vadd.f32 %v171, %v172
    %v174 = vrot.slane %v173, 1
    %v175 = vadd.f32 %v173, %v174
    %v176 = vrot.slane %v158, 4
    %v177 = vadd.f32 %v158, %v176
    %v178 = vrot.slane %v177, 2
    %v179 = vadd.f32 %v177, %v178
    %v180 = vrot.slane %v179, 1
    %v181 = vadd.f32 %v179, %v180
    %v182 = vrot.slane %v159, 4
    %v183 = vadd.f32 %v159, %v182
    %v184 = vrot.slane %v183, 2
    %v185 = vadd.f32 %v183, %v184
    %v186 = vrot.slane %v185, 1
    %v187 = vadd.f32 %v185, %v186
    %v188 = vrot.slane %v160, 4
    %v189 = vadd.f32 %v160, %v188
    %v190 = vrot.slane %v189, 2
    %v191 = vadd.f32 %v189, %v190
    %v192 = vrot.slane %v191, 1
    %v193 = vadd.f32 %v191, %v192
    %v194 = vrot.slane %v161, 4
    %v195 = vadd.f32 %v161, %v194
    %v196 = vrot.slane %v195, 2
    %v197 = vadd.f32 %v195, %v196
    %v198 = vrot.slane %v197, 1
    %v199 = vadd.f32 %v197, %v198
    %v200 = vrot.slane %v162, 4
    %v201 = vadd.f32 %v162, %v200
    %v202 = vrot.slane %v201, 2
    %v203 = vadd.f32 %v201, %v202
    %v204 = vrot.slane %v203, 1
    %v205 = vadd.f32 %v203, %v204
    %v206 = vrot.slane %v163, 4
    %v207 = vadd.f32 %v163, %v206
    %v208 = vrot.slane %v207, 2
    %v209 = vadd.f32 %v207, %v208
    %v210 = vrot.slane %v209, 1
    %v211 = vadd.f32 %v209, %v210
    %v212 = vld [vmem:[#allocation2] sm:$0xff]
    %v213 = vpack.c.bf16 %v169, %v169
    %v214 = vpack.c.bf16 %v175, %v175
    %v215 = vpack.c.bf16 %v181, %v181
    %v216 = vpack.c.bf16 %v187, %v187
    %v217 = vpack.c.bf16 %v193, %v193
    %v218 = vpack.c.bf16 %v199, %v199
    %v219 = vpack.c.bf16 %v205, %v205
    %v220 = vpack.c.bf16 %v211, %v211
    %v221 = vld [vmem:[#allocation9] sm:$0xf]
    %v222 = vld [vmem:[#allocation9 + $0x4] sm:$0xf]
    %v223 = vld [vmem:[#allocation9 + $0x8] sm:$0xf]
    %v224 = vld [vmem:[#allocation9 + $0xc] sm:$0xf]
    %v225 = vld [vmem:[#allocation9 + $0x10] sm:$0xf]
    %v226 = vld [vmem:[#allocation9 + $0x14] sm:$0xf]
    %v227 = vld [vmem:[#allocation9 + $0x18] sm:$0xf]
    %v228 = vld [vmem:[#allocation9 + $0x1c] sm:$0xf]
    %v229 = vld [vmem:[#allocation9 + $0x20] sm:$0xf]
    %v230 = vld [vmem:[#allocation9 + $0x24] sm:$0xf]
    %v231 = vld [vmem:[#allocation9 + $0x28] sm:$0xf]
    %v232 = vld [vmem:[#allocation9 + $0x2c] sm:$0xf]
    %v233 = vld [vmem:[#allocation9 + $0x30] sm:$0xf]
    %v234 = vld [vmem:[#allocation9 + $0x34] sm:$0xf]
    %v235 = vld [vmem:[#allocation9 + $0x38] sm:$0xf]
    %v236 = vld [vmem:[#allocation9 + $0x3c] sm:$0xf]
    %v245 = vunpack.c.l.b16 %v213
    %v246 = vunpack.c.l.b16 %v214
    %v247 = vunpack.c.l.b16 %v215
    %v248 = vunpack.c.l.b16 %v216
    %v249 = vunpack.c.l.b16 %v217
    %v250 = vunpack.c.l.b16 %v218
    %v251 = vunpack.c.l.b16 %v219
    %v252 = vunpack.c.l.b16 %v220
    %vm253 = vcmask 1041409
    %v254 = vsel %vm253, %v246, %v245
    %vm255 = vcmask 1042434
    %v256 = vsel %vm255, %v247, %v254
    %vm257 = vcmask 1043459
    %v258 = vsel %vm257, %v248, %v256
    %vm259 = vcmask 1044484
    %v260 = vsel %vm259, %v249, %v258
    %vm261 = vcmask 1045509
    %v262 = vsel %vm261, %v250, %v260
    %vm263 = vcmask 1046534
    %v264 = vsel %vm263, %v251, %v262
    %vm265 = vcmask 1047559
    %v266 = vsel %vm265, %v252, %v264
    %v267 = vpack.c.b16 %v266, %v266
    %v285 = vunpack.c.l.b16 %v221
    %v286 = vunpack.c.l.b16 %v222
    %v287 = vunpack.c.l.b16 %v223
    %v288 = vunpack.c.l.b16 %v224
    %v289 = vunpack.c.l.b16 %v225
    %v290 = vunpack.c.l.b16 %v226
    %v291 = vunpack.c.l.b16 %v227
    %v292 = vunpack.c.l.b16 %v228
    %v293 = vunpack.c.l.b16 %v229
    %v294 = vunpack.c.l.b16 %v230
    %v295 = vunpack.c.l.b16 %v231
    %v296 = vunpack.c.l.b16 %v232
    %v297 = vunpack.c.l.b16 %v233
    %v298 = vunpack.c.l.b16 %v234
    %v299 = vunpack.c.l.b16 %v235
    %v300 = vunpack.c.l.b16 %v236
    %v301 = vpack.c.b16 %v286, %v285
    %v302 = vpack.c.b16 %v288, %v287
    %v303 = vpack.c.b16 %v290, %v289
    %v304 = vpack.c.b16 %v292, %v291
    %v305 = vpack.c.b16 %v294, %v293
    %v306 = vpack.c.b16 %v296, %v295
    %v307 = vpack.c.b16 %v298, %v297
    %v308 = vpack.c.b16 %v300, %v299
    %317 = vmatprep.subr.bf16.mxu0 0
    %318 = vmatpush1.bf16.msra.mxu0 %v301
    %319 = vmatprep.subr.bf16.mxu0 0
    %320 = vmatpush1.bf16.msra.mxu0 %v302
    %321 = vmatprep.subr.bf16.mxu0 0
    %322 = vmatpush1.bf16.msra.mxu0 %v303
    %323 = vmatprep.subr.bf16.mxu0 0
    %324 = vmatpush1.bf16.msra.mxu0 %v304
    %325 = vmatprep.subr.bf16.mxu0 0
    %326 = vmatpush1.bf16.msra.mxu0 %v305
    %327 = vmatprep.subr.bf16.mxu0 0
    %328 = vmatpush1.bf16.msra.mxu0 %v306
    %329 = vmatprep.subr.bf16.mxu0 0
    %330 = vmatpush1.bf16.msra.mxu0 %v307
    %331 = vmatprep.subr.bf16.mxu0 0
    %332 = vmatpush1.bf16.msra.mxu0 %v308
    %333 = vmatprep.subr.bf16.mxu0 0
    %334 = vmatpush1.bf16.msra.mxu0 0
    %335 = vmatprep.subr.bf16.mxu0 0
    %336 = vmatpush1.bf16.msra.mxu0 0
    %337 = vmatprep.subr.bf16.mxu0 0
    %338 = vmatpush1.bf16.msra.mxu0 0
    %339 = vmatprep.subr.bf16.mxu0 0
    %340 = vmatpush1.bf16.msra.mxu0 0
    %341 = vmatprep.subr.bf16.mxu0 0
    %342 = vmatpush1.bf16.msra.mxu0 0
    %343 = vmatprep.subr.bf16.mxu0 0
    %344 = vmatpush1.bf16.msra.mxu0 0
    %345 = vmatprep.subr.bf16.mxu0 0
    %346 = vmatpush1.bf16.msra.mxu0 0
    %347 = vmatprep.subr.bf16.mxu0 0
    %348 = vmatpush1.bf16.msra.mxu0 0
    %349 = vmatprep.mubr.bf16.mxu0 0
    %350 = vmatmul.mubr.bf16.gmra.mrb[0].mxu0 %v267
    %v351 = vpop.f32.mrb[0].mxu0
    %v352 = vadd.f32 0.0, %v351
    %v353 = vpop.f32.mrb[0].mxu0
    %v354 = vpop.f32.mrb[0].mxu0
    %v355 = vpop.f32.mrb[0].mxu0
    %356 = vdwg.mxu0
    %v357 = vadd.f32 %v212, %v352
    %358 = vst [vmem:[#allocation2] sm:$0xff] %v357
    %v359 = vld [vmem:[#allocation3] sm:$0xff]
    %vm360 = vcmask 64512
    %v361 = vsel %vm360, %v81, 0.0
    %362 = vadd.xlane.f32.xlu0 %v361
    %v363 = vpop.xlane.xlu0 %362
    %v364 = vadd.f32 %v359, %v363
    %vm365 = vcmask 7168
    %366 = vst.msk [vmem:[#allocation3] sm:$0xff] %vm365, %v364
    // Predicated region
    $region42: #{tpu_custom_call.1} parent=1 // pred_check
      %p367 = pneg %p73
    $region43: #{tpu_custom_call.1} parent=1 // pred_check_branch
      %369 = sbr.rel (%p367) target = $region45
    $region44: #{tpu_custom_call.1} parent=1 // pred_region
      %v370 = vld [vmem:[#allocation3] sm:$0xff]
      %v371 = vmax.f32 %v370, 1e-09
      %v372 = vrcp.pop %v371
      %vm373 = vcmp.gt.f32.partialorder %v370, 0.0
      %v374 = vsel %vm373, 1.0, 0.0
      %v375 = vld [vmem:[#allocation2] sm:$0xff]
      %377 = vset.pattern.permute.xlu0 0
      %378 = vperm.xlu0 %377, %v372
      %v379 = vpop.permute.xlu0 %378
      %v381 = vmul.f32 %v375, %v379
      %v382 = vpack.c.bf16 %v381, %v381
      %v383 = vld [vmem:[#allocation10] sm:$0xf]
      %v384 = vld [vmem:[#allocation10 + $0x4] sm:$0xf]
      %v385 = vld [vmem:[#allocation10 + $0x8] sm:$0xf]
      %v386 = vld [vmem:[#allocation10 + $0xc] sm:$0xf]
      %v387 = vld [vmem:[#allocation10 + $0x10] sm:$0xf]
      %v388 = vld [vmem:[#allocation10 + $0x14] sm:$0xf]
      %v389 = vld [vmem:[#allocation10 + $0x18] sm:$0xf]
      %v390 = vld [vmem:[#allocation10 + $0x1c] sm:$0xf]
      %v391 = vld [vmem:[#allocation10 + $0x20] sm:$0xf]
      %v392 = vld [vmem:[#allocation10 + $0x24] sm:$0xf]
      %v393 = vld [vmem:[#allocation10 + $0x28] sm:$0xf]
      %v394 = vld [vmem:[#allocation10 + $0x2c] sm:$0xf]
      %v395 = vld [vmem:[#allocation10 + $0x30] sm:$0xf]
      %v396 = vld [vmem:[#allocation10 + $0x34] sm:$0xf]
      %v397 = vld [vmem:[#allocation10 + $0x38] sm:$0xf]
      %v398 = vld [vmem:[#allocation10 + $0x3c] sm:$0xf]
      %v399 = vld [vmem:[%s4] sm:$0x1]
      %v401 = vlaneseq
      %v402 = vshrl.u32 %v401, 7
      %v403 = vsub.s32 0, %v402
      %v404 = vrot.slane %v399, %v403
      %407 = vset.pattern.permute.xlu0 0
      %408 = vperm.xlu0 %407, %v374
      %v409 = vpop.permute.xlu0 %408
      %v411 = vmul.f32 %v404, %v409
      %v428 = vunpack.c.l.b16 %v383
      %v429 = vunpack.c.l.b16 %v384
      %v430 = vunpack.c.l.b16 %v385
      %v431 = vunpack.c.l.b16 %v386
      %v432 = vunpack.c.l.b16 %v387
      %v433 = vunpack.c.l.b16 %v388
      %v434 = vunpack.c.l.b16 %v389
      %v435 = vunpack.c.l.b16 %v390
      %v436 = vunpack.c.l.b16 %v391
      %v437 = vunpack.c.l.b16 %v392
      %v438 = vunpack.c.l.b16 %v393
      %v439 = vunpack.c.l.b16 %v394
      %v440 = vunpack.c.l.b16 %v395
      %v441 = vunpack.c.l.b16 %v396
      %v442 = vunpack.c.l.b16 %v397
      %v443 = vunpack.c.l.b16 %v398
      %v444 = vpack.c.b16 %v429, %v428
      %v445 = vpack.c.b16 %v431, %v430
      %v446 = vpack.c.b16 %v433, %v432
      %v447 = vpack.c.b16 %v435, %v434
      %v448 = vpack.c.b16 %v437, %v436
      %v449 = vpack.c.b16 %v439, %v438
      %v450 = vpack.c.b16 %v441, %v440
      %v451 = vpack.c.b16 %v443, %v442
      %460 = vmatprep.subr.bf16.mxu0 0
      %461 = vmatpush1.bf16.msra.mxu0 %v444
      %462 = vmatprep.subr.bf16.mxu0 0
      %463 = vmatpush1.bf16.msra.mxu0 %v445
      %464 = vmatprep.subr.bf16.mxu0 0
      %465 = vmatpush1.bf16.msra.mxu0 %v446
      %466 = vmatprep.subr.bf16.mxu0 0
      %467 = vmatpush1.bf16.msra.mxu0 %v447
      %468 = vmatprep.subr.bf16.mxu0 0
      %469 = vmatpush1.bf16.msra.mxu0 %v448
      %470 = vmatprep.subr.bf16.mxu0 0
      %471 = vmatpush1.bf16.msra.mxu0 %v449
      %472 = vmatprep.subr.bf16.mxu0 0
      %473 = vmatpush1.bf16.msra.mxu0 %v450
      %474 = vmatprep.subr.bf16.mxu0 0
      %475 = vmatpush1.bf16.msra.mxu0 %v451
      %476 = vmatprep.subr.bf16.mxu0 0
      %477 = vmatpush1.bf16.msra.mxu0 0
      %478 = vmatprep.subr.bf16.mxu0 0
      %479 = vmatpush1.bf16.msra.mxu0 0
      %480 = vmatprep.subr.bf16.mxu0 0
      %481 = vmatpush1.bf16.msra.mxu0 0
      %482 = vmatprep.subr.bf16.mxu0 0
      %483 = vmatpush1.bf16.msra.mxu0 0
      %484 = vmatprep.subr.bf16.mxu0 0
      %485 = vmatpush1.bf16.msra.mxu0 0
      %486 = vmatprep.subr.bf16.mxu0 0
      %487 = vmatpush1.bf16.msra.mxu0 0
      %488 = vmatprep.subr.bf16.mxu0 0
      %489 = vmatpush1.bf16.msra.mxu0 0
      %490 = vmatprep.subr.bf16.mxu0 0
      %491 = vmatpush1.bf16.msra.mxu0 0
      %492 = vmatprep.mubr.bf16.mxu0 0
      %493 = vmatmul.mubr.bf16.gmra.mrb[0].mxu0 %v382
      %v494 = vpop.f32.mrb[0].mxu0
      %v495 = vadd.f32 %v411, %v494
      %v496 = vpop.f32.mrb[0].mxu0
      %v497 = vpop.f32.mrb[0].mxu0
      %v498 = vpop.f32.mrb[0].mxu0
      %499 = vdwg.mxu0
      %500 = vst [vmem:[#allocation12] sm:$0xff] %v495
    $region45: #{tpu_custom_call.1} parent=1 // pred_fallthru
      _
    // Predicated region
    $region46: #{tpu_custom_call.1} parent=1 // pred_check
      _
    $region47: #{tpu_custom_call.1} parent=1 // pred_check_branch
      %502 = sbr.rel (0) target = $region49
    $region48: #{tpu_custom_call.1} parent=1 // pred_region
      %s504 = ssub.s32 128, 128
      %505 = vsyncadd [#allocation6], %s504
      %s507 = sshll.u32 [#allocation12], 4
      %s508 = int_to_ptr.vmem [resolvable:$true] %s507
      %510 = dma.vmem_to_hbm [thread:$0]  %s508, 128, %s5, [#allocation6]
    $region49: #{tpu_custom_call.1} parent=1 // pred_fallthru
      _
    // Predicated region
    $region50: #{tpu_custom_call.1} parent=1 // pred_check
      _
    $region51: #{tpu_custom_call.1} parent=1 // pred_check_branch
      %512 = sbr.rel (0) target = $region53
    $region52: #{tpu_custom_call.1} parent=1 // pred_region
      %513 = dma.done [#allocation6], 128
    $region53: #{tpu_custom_call.1} parent=1 // pred_fallthru
      _
    %514 = vsyncpa [#allocation5], 1
    %515 = vsyncpa [#allocation8], 1
    %516 = vsyncpa [#allocation11], 1
    %517 = vsyncpa [#allocation6], 1

</llo_original>
